<compile_context>
chip_gen: v5e
topology: v5e:2x2
jax: 0.10.0
libtpu: 0.0.40
codegen_flags: <defaults>
</compile_context>

<pallas_src>
import functools

import jax
import jax.numpy as jnp
from jax.experimental import pallas as pl
from jax.experimental.pallas import tpu as pltpu

NSEGMENTS = 2
TARGET_TILE_BYTES = 4 * 1024 * 1024   # ~4 MiB per pipeline buffer (per array)
MIN_SPLIT_BYTES = 1 << 20             # split the grid for streams > 1 MiB


def _aplu_kernel(alpha_ref, beta_ref, x_ref, o_ref, *, nsegments, compute_dtype):
    # alpha_ref / beta_ref: SMEM refs of shape (nsegments,), float32 scalars.
    # x_ref / o_ref: lane-dense VMEM tiles of shape (block_rows, width).
    x = x_ref[...].astype(compute_dtype)          # no-op when dtype already matches
    y = jnp.maximum(x, 0.0)
    for i in range(nsegments):                    # static unroll (Python int)
        a = alpha_ref[i].astype(compute_dtype)    # cheap scalar casts
        b = beta_ref[i].astype(compute_dtype)
        # fold beta into the relu argument: relu(-x + b) == relu(b - x)
        y = y + a * jnp.maximum(b - x, 0.0)
    o_ref[...] = y.astype(o_ref.dtype)


def _choose_width(n):
    """Widest lane-dense last dim that divides n (True = no padding needed)."""
    for w in (8192, 4096, 2048, 1024, 512, 256, 128):
        if n % w == 0:
            return w, True
    return 2048, False  # rare fallback: keep 2048 lanes, pad up to a multiple


def _aplu_pallas_2d(x2, alpha32, beta32, nsegments, compute_dtype):
    """Run the kernel on a lane-dense 2-D slab (rows, width)."""
    rows, width = x2.shape
    dtype = x2.dtype
    itemsize = jnp.dtype(dtype).itemsize
    row_align = max(8, 32 // itemsize)  # sublane packing: 8 f32 / 16 bf16 / 32 int8

    max_block_rows = max(
        row_align,
        (TARGET_TILE_BYTES // (width * itemsize)) // row_align * row_align,
    )
    total_bytes = rows * width * itemsize

    if rows <= max_block_rows:
        if total_bytes >= MIN_SPLIT_BYTES and rows >= 2 * row_align:
            # Big enough to care: split in two so both v7x TensorCores get work.
            block_rows = pl.cdiv(pl.cdiv(rows, 2), row_align) * row_align
        else:
            block_rows = rows  # full-extent dim bypasses the (8,128) rule
    else:
        block_rows = max_block_rows
        nprog = pl.cdiv(rows, block_rows)
        if nprog > 1 and nprog % 2 == 1:
            # Prefer an even program count for megacore load balance on v7x.
            block_rows = max(
                row_align,
                pl.cdiv(pl.cdiv(rows, nprog + 1), row_align) * row_align,
            )
    grid = (pl.cdiv(rows, block_rows),)  # partial tail block is fine: elementwise

    return pl.pallas_call(
        functools.partial(
            _aplu_kernel, nsegments=nsegments, compute_dtype=compute_dtype
        ),
        out_shape=jax.ShapeDtypeStruct((rows, width), dtype),
        grid=grid,
        in_specs=[
            pl.BlockSpec(memory_space=pltpu.SMEM),  # alpha
            pl.BlockSpec(memory_space=pltpu.SMEM),  # beta
            pl.BlockSpec((block_rows, width), lambda i: (i, 0)),
        ],
        out_specs=pl.BlockSpec((block_rows, width), lambda i: (i, 0)),
        compiler_params=pltpu.CompilerParams(
            dimension_semantics=("parallel",),  # megacore split on v7x
            vmem_limit_bytes=32 << 20,          # 16 MiB actually used
        ),
    )(alpha32, beta32, x2)


def aplu(x, alpha, beta):
    """APLU forward. x: any-shape float array; alpha/beta: (nsegments,)."""
    nsegments = alpha.shape[0]
    orig_shape = x.shape
    orig_dtype = x.dtype

    n = x.size
    if n == 0:
        return x

    # bf16 computes natively on v6e/v7x VPUs; everything else goes through f32
    # (mandatory on v5e, and the right choice for f32 inputs anyway).
    compute_dtype = jnp.bfloat16 if orig_dtype == jnp.bfloat16 else jnp.float32

    alpha32 = alpha.astype(jnp.float32)
    beta32 = beta.astype(jnp.float32)

    # reshape of a contiguous array is free (no extra HBM pass); keep input dtype.
    flat = x.reshape(-1)

    width, divisible = _choose_width(n)
    if divisible:
        n_pad = n
    else:
        # TODO(synk): avoid the full-tensor pad pass (dynamic_update_slice into a
        # donated output) for non-128-divisible sizes; rare path, kept simple.
        n_pad = pl.cdiv(n, width) * width
        flat = jnp.pad(flat, (0, n_pad - n))
    rows = n_pad // width
    x2 = flat.reshape(rows, width)

    out2 = _aplu_pallas_2d(x2, alpha32, beta32, nsegments, compute_dtype)

    out_flat = out2.reshape(-1)
    if not divisible:
        out_flat = out_flat[:n]
    return out_flat.reshape(orig_shape)


def aplu_reference(x, alpha, beta):
    xf = x.astype(jnp.float32)
    y = jnp.maximum(xf, 0.0)
    for i in range(alpha.shape[0]):
        y = y + alpha[i] * jnp.maximum(-xf + beta[i], 0.0)
    return y


if __name__ == "__main__":
    key = jax.random.PRNGKey(0)
    kx, ka, kb = jax.random.split(key, 3)

    # Deterministic parameter init, mimicking torch.rand(nsegments) (uniform [0,1))
    alpha = jax.random.uniform(ka, (NSEGMENTS,), dtype=jnp.float32)
    beta = jax.random.uniform(kb, (NSEGMENTS,), dtype=jnp.float32)

    # 1) PyTorch-style NCHW conv activation: batch=2, channels=4, spatial=16x16 (f32)
    x = jax.random.normal(kx, (2, 4, 16, 16), dtype=jnp.float32)
    out = jax.block_until_ready(aplu(x, alpha, beta))
    ref = aplu_reference(x, alpha, beta)
    assert out.shape == x.shape and out.dtype == x.dtype
    assert jnp.allclose(out, ref, atol=1e-5, rtol=1e-5), "f32 mismatch vs reference"

    # 2) bf16 input exercises the native-bf16 compute path (relaxed tolerance)
    x_bf16 = x.astype(jnp.bfloat16)
    out_bf16 = jax.block_until_ready(aplu(x_bf16, alpha, beta))
    ref_bf16 = aplu_reference(x_bf16, alpha, beta)
    assert out_bf16.shape == x_bf16.shape and out_bf16.dtype == jnp.bfloat16
    assert jnp.allclose(out_bf16.astype(jnp.float32), ref_bf16, atol=5e-2, rtol=5e-2), \
        "bf16 mismatch vs reference"

    # 3) non-128-divisible size exercises the padding fallback path
    x_odd = jax.random.normal(kx, (3, 5, 13, 17), dtype=jnp.float32)  # 3315 elements
    out_odd = jax.block_until_ready(aplu(x_odd, alpha, beta))
    ref_odd = aplu_reference(x_odd, alpha, beta)
    assert out_odd.shape == x_odd.shape and out_odd.dtype == x_odd.dtype
    assert jnp.allclose(out_odd, ref_odd, atol=1e-5, rtol=1e-5), "fallback mismatch"

    print("KERNEL_OK")
</pallas_src>

<mosaic_0001>
module attributes {stable_mosaic.version = 11 : i64} {
  func.func @_aplu_kernel(%arg0: i32, %arg1: memref<2xf32, #tpu.memory_space<smem>>, %arg2: memref<2xf32, #tpu.memory_space<smem>>, %arg3: memref<1x2048xf32, #tpu.memory_space<vmem>>, %arg4: memref<1x2048xf32, #tpu.memory_space<vmem>>) attributes {dimension_semantics = [#tpu.dimension_semantics<parallel>], iteration_bounds = array<i64: 1>, scalar_prefetch = 0 : i64, scratch_operands = 0 : i64, tpu.core_type = #tpu.core_type<tc>, window_params = [{transform_indices = @transform_0, window_bounds = array<i64: 2>}, {transform_indices = @transform_1, window_bounds = array<i64: 2>}, {transform_indices = @transform_2, window_bounds = array<i64: 1, 2048>}, {transform_indices = @transform_3, window_bounds = array<i64: 1, 2048>}]} {
    %c0 = arith.constant 0 : index
    %c0_0 = arith.constant 0 : index
    %0 = vector.load %arg3[%c0, %c0_0] : memref<1x2048xf32, #tpu.memory_space<vmem>>, vector<1x2048xf32>
    %cst = arith.constant 0.000000e+00 : f32
    %1 = vector.broadcast %cst : f32 to vector<1x2048xf32>
    %2 = arith.maximumf %0, %1 : vector<1x2048xf32>
    %c0_1 = arith.constant 0 : index
    %3 = memref.load %arg1[%c0_1] : memref<2xf32, #tpu.memory_space<smem>>
    %c0_2 = arith.constant 0 : index
    %4 = memref.load %arg2[%c0_2] : memref<2xf32, #tpu.memory_space<smem>>
    %5 = vector.broadcast %4 : f32 to vector<1x2048xf32>
    %6 = arith.subf %5, %0 : vector<1x2048xf32>
    %cst_3 = arith.constant 0.000000e+00 : f32
    %7 = vector.broadcast %cst_3 : f32 to vector<1x2048xf32>
    %8 = arith.maximumf %6, %7 : vector<1x2048xf32>
    %9 = vector.broadcast %3 : f32 to vector<1x2048xf32>
    %10 = arith.mulf %9, %8 : vector<1x2048xf32>
    %11 = arith.addf %2, %10 : vector<1x2048xf32>
    %c1 = arith.constant 1 : index
    %12 = memref.load %arg1[%c1] : memref<2xf32, #tpu.memory_space<smem>>
    %c1_4 = arith.constant 1 : index
    %13 = memref.load %arg2[%c1_4] : memref<2xf32, #tpu.memory_space<smem>>
    %14 = vector.broadcast %13 : f32 to vector<1x2048xf32>
    %15 = arith.subf %14, %0 : vector<1x2048xf32>
    %cst_5 = arith.constant 0.000000e+00 : f32
    %16 = vector.broadcast %cst_5 : f32 to vector<1x2048xf32>
    %17 = arith.maximumf %15, %16 : vector<1x2048xf32>
    %18 = vector.broadcast %12 : f32 to vector<1x2048xf32>
    %19 = arith.mulf %18, %17 : vector<1x2048xf32>
    %20 = arith.addf %11, %19 : vector<1x2048xf32>
    %c0_6 = arith.constant 0 : index
    %c0_7 = arith.constant 0 : index
    %21 = vector.load %arg4[%c0_6, %c0_7] : memref<1x2048xf32, #tpu.memory_space<vmem>>, vector<1x2048xf32>
    tpu.vector_store %arg4[%c0_6, %c0_7], %20 {strides = array<i32>} : memref<1x2048xf32, #tpu.memory_space<vmem>>, vector<1x2048xf32>,
    return
  }
  func.func @transform_0(%arg0: i32) -> i32 {
    %c0_i32 = arith.constant 0 : i32
    %c0_i32_0 = arith.constant 0 : i32
    return %c0_i32 : i32
  }
  func.func @transform_1(%arg0: i32) -> i32 {
    %c0_i32 = arith.constant 0 : i32
    %c0_i32_0 = arith.constant 0 : i32
    return %c0_i32 : i32
  }
  func.func @transform_2(%arg0: i32) -> (i32, i32) {
    %c0_i32 = arith.constant 0 : i32
    %c0_i32_0 = arith.constant 0 : i32
    return %arg0, %c0_i32 : i32, i32
  }
  func.func @transform_3(%arg0: i32) -> (i32, i32) {
    %c0_i32 = arith.constant 0 : i32
    %c0_i32_0 = arith.constant 0 : i32
    return %arg0, %c0_i32 : i32, i32
  }
}

</mosaic_0001>

<llo_original>
// kernel: tpu_custom_call.1
$region0: #{tpu_custom_call.1}
  #allocation0 [shape = 'u32[]', space=smem, size = 0x4, offset = 0x4, fixed_abs, tag = 'smem constant byte address 0x4 - core index']
  #allocation1 [shape = 'u32[72,128]{1,0:T(1,128)}', space=vmem, size = 0x9000, scoped, tag = 'internal scratch']
  %s0 = inlined_call_operand.hbm [shape: f32[2], index: 0, kind: input, shape index: {}]
  %s1 = inlined_call_operand.hbm [shape: f32[2], index: 1, kind: input, shape index: {}]
  %s2 = inlined_call_operand.hbm [shape: f32[1,2048], index: 2, kind: input, shape index: {}]
  %s3 = inlined_call_operand.hbm [shape: f32[1,2048], index: 3, kind: output, shape index: {}]
  %s4 = sld [smem:[#allocation0]]
  $region34: #{tpu_custom_call.1} parent=0
    _
  %s6 = ssub.s32 1, %s4
  %s7 = scalar_select 0, %s6, %s4
  $region1: #{tpu_custom_call.1} parent=0
    #allocation2 [shape = 'u8[512]{0}', space=smem, size = 0x200, scoped, tag = 'input window, operand 0, single buffered']
    #allocation3 [shape = 's32[1]{0}', space=sflag, size = 0x4, scoped, tag = 'scoped memory for tpu_custom_call.1']
    #allocation4 [shape = 's32[1]{0}', space=sflag, size = 0x4, scoped, tag = 'scoped memory for tpu_custom_call.1']
    #allocation5 [shape = 's32[1]{0}', space=sflag, size = 0x4, scoped, tag = 'scoped memory for tpu_custom_call.1']
    #allocation6 [shape = 'u8[512]{0}', space=smem, size = 0x200, scoped, tag = 'input window, operand 1, single buffered']
    #allocation7 [shape = 's32[1]{0}', space=sflag, size = 0x4, scoped, tag = 'scoped memory for tpu_custom_call.1']
    #allocation8 [shape = 'u8[8192]{0}', space=vmem, size = 0x2000, scoped, tag = 'input window, operand 2, single buffered']
    #allocation9 [shape = 'u8[8192]{0}', space=vmem, size = 0x2000, scoped, tag = 'output window, operand 0, single buffered']
    %8 = vsyncpa [#allocation5], 0
    %9 = vsyncpa [#allocation7], 0
    %10 = vsyncpa [#allocation3], 0
    %11 = vsyncpa [#allocation4], 0
    // Predicated region
    $region2: #{tpu_custom_call.1} parent=1 // pred_check
      _
    $region3: #{tpu_custom_call.1} parent=1 // pred_check_branch
      %13 = sbr.rel (0) target = $region5
    $region4: #{tpu_custom_call.1} parent=1 // pred_region
      %15 = vsyncadd [#allocation5], 0
      %s17 = sshll.u32 %s0, 4
      %s18 = int_to_ptr.hbm [resolvable:$true] %s17
      %20 = dma.hbm_to_smem %s18, 16, [#allocation2], [#allocation5]
    $region5: #{tpu_custom_call.1} parent=1 // pred_fallthru
      _
    // Predicated region
    $region6: #{tpu_custom_call.1} parent=1 // pred_check
      _
    $region7: #{tpu_custom_call.1} parent=1 // pred_check_branch
      %22 = sbr.rel (0) target = $region9
    $region8: #{tpu_custom_call.1} parent=1 // pred_region
      %24 = vsyncadd [#allocation7], 0
      %s26 = sshll.u32 %s1, 4
      %s27 = int_to_ptr.hbm [resolvable:$true] %s26
      %29 = dma.hbm_to_smem %s27, 16, [#allocation6], [#allocation7]
    $region9: #{tpu_custom_call.1} parent=1 // pred_fallthru
      _
    // Predicated region
    $region10: #{tpu_custom_call.1} parent=1 // pred_check
      _
    $region11: #{tpu_custom_call.1} parent=1 // pred_check_branch
      %31 = sbr.rel (0) target = $region13
    $region12: #{tpu_custom_call.1} parent=1 // pred_region
      %33 = vsyncadd [#allocation3], 0
      %s35 = sshll.u32 %s2, 4
      %s36 = int_to_ptr.hbm [resolvable:$true] %s35
      %s37 = sshll.u32 [#allocation8], 4
      %s38 = int_to_ptr.vmem [resolvable:$true] %s37
      %40 = dma.hbm_to_vmem [thread:$0]  %s36, 256, %s38, [#allocation3]
    $region13: #{tpu_custom_call.1} parent=1 // pred_fallthru
      _
    // Predicated region
    $region14: #{tpu_custom_call.1} parent=1 // pred_check
      _
    $region15: #{tpu_custom_call.1} parent=1 // pred_check_branch
      %42 = sbr.rel (0) target = $region17
    $region16: #{tpu_custom_call.1} parent=1 // pred_region
      %44 = dma.done [#allocation5], 16
    $region17: #{tpu_custom_call.1} parent=1 // pred_fallthru
      _
    // Predicated region
    $region18: #{tpu_custom_call.1} parent=1 // pred_check
      _
    $region19: #{tpu_custom_call.1} parent=1 // pred_check_branch
      %46 = sbr.rel (0) target = $region21
    $region20: #{tpu_custom_call.1} parent=1 // pred_region
      %48 = dma.done [#allocation7], 16
    $region21: #{tpu_custom_call.1} parent=1 // pred_fallthru
      _
    // Predicated region
    $region22: #{tpu_custom_call.1} parent=1 // pred_check
      _
    $region23: #{tpu_custom_call.1} parent=1 // pred_check_branch
      %50 = sbr.rel (0) target = $region25
    $region24: #{tpu_custom_call.1} parent=1 // pred_region
      %52 = dma.done [#allocation3], 256
    $region25: #{tpu_custom_call.1} parent=1 // pred_fallthru
      _
    %53 = sfence
    %v54 = vld [vmem:[#allocation8] sm:$0xff]
    %v55 = vld [vmem:[#allocation8 + $0x8] sm:$0xff]
    %v56 = vmax.f32 %v54, 0.0
    %v57 = vmax.f32 %v55, 0.0
    %s58 = sld [smem:[#allocation2]]
    %s59 = sld [smem:[#allocation6]]
    %v60 = vstv %s59
    %v61 = vsub.f32 %v60, %v54
    %v62 = vsub.f32 %v60, %v55
    %v63 = vmax.f32 %v61, 0.0
    %v64 = vmax.f32 %v62, 0.0
    %v65 = vstv %s58
    %v66 = vmul.f32 %v65, %v63
    %v67 = vmul.f32 %v65, %v64
    %v68 = vadd.f32 %v56, %v66
    %v69 = vadd.f32 %v57, %v67
    %s70 = sld [smem:[#allocation2 + $0x1]]
    %s71 = sld [smem:[#allocation6 + $0x1]]
    %v72 = vstv %s71
    %v73 = vsub.f32 %v72, %v54
    %v74 = vsub.f32 %v72, %v55
    %v75 = vmax.f32 %v73, 0.0
    %v76 = vmax.f32 %v74, 0.0
    %v77 = vstv %s70
    %v78 = vmul.f32 %v77, %v75
    %v79 = vmul.f32 %v77, %v76
    %v80 = vadd.f32 %v68, %v78
    %v81 = vadd.f32 %v69, %v79
    %82 = vst [vmem:[#allocation9] sm:$0xff] %v80
    %83 = vst [vmem:[#allocation9 + $0x8] sm:$0xff] %v81
    // Predicated region
    $region26: #{tpu_custom_call.1} parent=1 // pred_check
      _
    $region27: #{tpu_custom_call.1} parent=1 // pred_check_branch
      %85 = sbr.rel (0) target = $region29
    $region28: #{tpu_custom_call.1} parent=1 // pred_region
      %87 = vsyncadd [#allocation4], 0
      %s89 = sshll.u32 [#allocation9], 4
      %s90 = int_to_ptr.vmem [resolvable:$true] %s89
      %s91 = sshll.u32 %s3, 4
      %s92 = int_to_ptr.hbm [resolvable:$true] %s91
      %94 = dma.vmem_to_hbm [thread:$0]  %s90, 256, %s92, [#allocation4]
    $region29: #{tpu_custom_call.1} parent=1 // pred_fallthru
      _
    // Predicated region
    $region30: #{tpu_custom_call.1} parent=1 // pred_check
      _
    $region31: #{tpu_custom_call.1} parent=1 // pred_check_branch
      %96 = sbr.rel (0) target = $region33
    $region32: #{tpu_custom_call.1} parent=1 // pred_region
      %98 = dma.done [#allocation4], 256
    $region33: #{tpu_custom_call.1} parent=1 // pred_fallthru
      _
    %99 = vsyncpa [#allocation3], 1
    %100 = vsyncpa [#allocation4], 1
    %101 = vsyncpa [#allocation5], 1
    %102 = vsyncpa [#allocation7], 1

</llo_original>
